<compile_context>
chip_gen: v6e
topology: v6e:2x2x1
jax: 0.10.0
libtpu: 0.0.40
codegen_flags: <defaults>
</compile_context>

<pallas_src>
import functools

import jax
import jax.numpy as jnp
from jax.experimental import pallas as pl
from jax.experimental.pallas import tpu as pltpu

H1 = 64
H2 = 32


def _round_up(x, m):
    return (x + m - 1) // m * m


def _cdiv(a, b):
    return (a + b - 1) // b


def _tpu_config():
    """Returns (scoped-VMEM limit to request, tensorcores per chip, is_v5e)."""
    kind = ""
    try:
        kind = jax.devices()[0].device_kind.lower()
    except Exception:
        pass
    try:
        vmem_cap = int(pltpu.get_tpu_info().vmem_capacity_bytes)
    except Exception:
        # Fall back to device-kind heuristics (v7x: 64 MiB per TC, else 128 MiB).
        vmem_cap = (64 << 20) if "v7" in kind else (128 << 20)
    # Request 3/4 of physical VMEM (capped), leaving headroom for Mosaic scratch.
    vmem_limit = max(32 << 20, min(vmem_cap * 3 // 4, 96 << 20))
    ncores = 2 if ("v7" in kind or "v4" in kind or "v5p" in kind) else 1
    is_v5e = ("v5 lite" in kind) or ("v5e" in kind)
    return vmem_limit, ncores, is_v5e


def _choose_block_m(B, D, vmem_limit, ncores):
    """Batch tile from a VMEM byte budget; even work split on 2-TC chips."""
    lanes = max(_round_up(D, 128), 128)  # x last dim is lane-padded in VMEM
    # Rough per-row VMEM bytes: double-buffered f32 x tile + in-kernel bf16
    # copy (~3 lane-padded rows), h1/h2 intermediates, (1, bm) output row.
    row_bytes = 3 * 4 * lanes + 8 * (H1 + H2) + 16
    budget = vmem_limit // 2             # keep half the limit as headroom
    bm = max(128, budget // row_bytes // 128 * 128)
    bm = min(bm, 32768)
    if ncores >= 2 and B > 128:
        # v7x / megacore: keep >= 2 "parallel" steps so both TensorCores work.
        bm = min(bm, max(128, _round_up(_cdiv(B, 2), 128)))
        gm = _cdiv(B, bm)
        if gm > 1 and gm % 2 == 1:       # best-effort even step count
            bm = max(128, _round_up(_cdiv(B, gm + 1), 128))
    if bm >= B:
        return B                          # single exact block: no padding/OOB
    return bm


def _mlp_kernel(x_ref, w1_ref, b1_ref, w2_ref, b2_ref, w3_ref, b3_ref, out_ref,
                *, compute_dtype):
    x = x_ref[...].astype(compute_dtype)                               # (bm, D)
    h1 = jnp.dot(x, w1_ref[...].astype(compute_dtype),
                 preferred_element_type=jnp.float32) + b1_ref[...]     # (bm, 64) f32
    h1 = jnp.maximum(h1, 0.0)
    h2 = jnp.dot(h1.astype(compute_dtype), w2_ref[...].astype(compute_dtype),
                 preferred_element_type=jnp.float32) + b2_ref[...]     # (bm, 32) f32
    h2 = jnp.maximum(h2, 0.0)
    # Last layer (32 -> 1): VPU multiply + XLU lane-reduce instead of an N=1
    # MXU matmul; result stored as a lane-dense (1, bm) row.
    y = jnp.sum(h2 * w3_ref[...], axis=-1)                             # (bm,)
    out_ref[...] = (y[None, :] + b3_ref[...]).astype(out_ref.dtype)    # (1, bm)


@functools.partial(jax.jit, static_argnames=("block_m", "compute_dtype"))
def mlp_forward(x, params, *, block_m=None, compute_dtype=jnp.bfloat16):
    """x: (B, D). Returns (B,) float32, matching MLP(x).squeeze(-1)."""
    w1, b1, w2, b2, w3, b3 = params
    B, D = x.shape

    vmem_limit, ncores, is_v5e = _tpu_config()
    if block_m is None:
        bm = _choose_block_m(B, D, vmem_limit, ncores)
    else:
        bm = min(_round_up(block_m, 128), _round_up(B, 128))
        if bm >= B:
            bm = B

    grid_m = _cdiv(B, bm)
    b_out = grid_m * bm   # only the cheap output slab is tile-padded; the tail
                          # x block reads OOB rows that out[:B] discards.

    x_spec_kwargs = {}
    if is_v5e and grid_m > 2:
        # v5e: lowest HBM bandwidth -> a third x buffer hides DMA latency.
        x_spec_kwargs["pipeline_mode"] = pl.Buffered(3)

    in_specs = [
        pl.BlockSpec((bm, D), lambda i: (i, 0), **x_spec_kwargs),  # x (pipelined)
        pl.BlockSpec((D, H1), lambda i: (0, 0)),                   # w1 (VMEM-resident)
        pl.BlockSpec((1, H1), lambda i: (0, 0)),                   # b1
        pl.BlockSpec((H1, H2), lambda i: (0, 0)),                  # w2
        pl.BlockSpec((1, H2), lambda i: (0, 0)),                   # b2
        pl.BlockSpec((1, H2), lambda i: (0, 0)),                   # w3 (PyTorch (out,in)=(1,32))
        pl.BlockSpec((1, 1), lambda i: (0, 0)),                    # b3
    ]

    flops = 2 * B * (D * H1 + H1 * H2 + H2)
    bytes_accessed = (B * D * x.dtype.itemsize + 4 * b_out
                      + 4 * (D * H1 + H1 + H1 * H2 + H2 + H2 + 1))

    out = pl.pallas_call(
        functools.partial(_mlp_kernel, compute_dtype=compute_dtype),
        out_shape=jax.ShapeDtypeStruct((1, b_out), jnp.float32),
        grid=(grid_m,),
        in_specs=in_specs,
        out_specs=pl.BlockSpec((1, bm), lambda i: (0, i)),          # lane-dense row
        compiler_params=pltpu.CompilerParams(
            dimension_semantics=("parallel",),
            vmem_limit_bytes=vmem_limit,
        ),
        cost_estimate=pl.CostEstimate(
            flops=flops, transcendentals=0, bytes_accessed=bytes_accessed),
    )(x, w1, b1, w2, b2, w3, b3)
    return out[0, :B]


def init_params(key, input_dim):
    """Synthetic params. w1/w2 stored as (in, out) so the kernel does x @ W;
    w3 kept in PyTorch nn.Linear layout (out, in) = (1, 32)."""
    ks = jax.random.split(key, 6)
    w1 = jax.random.normal(ks[0], (input_dim, H1), jnp.float32) * (1.0 / jnp.sqrt(input_dim))
    b1 = jax.random.normal(ks[1], (1, H1), jnp.float32) * 0.1
    w2 = jax.random.normal(ks[2], (H1, H2), jnp.float32) * (1.0 / jnp.sqrt(H1))
    b2 = jax.random.normal(ks[3], (1, H2), jnp.float32) * 0.1
    w3 = jax.random.normal(ks[4], (1, H2), jnp.float32) * (1.0 / jnp.sqrt(H2))
    b3 = jax.random.normal(ks[5], (1, 1), jnp.float32) * 0.1
    return (w1, b1, w2, b2, w3, b3)


def mlp_reference(x, params):
    w1, b1, w2, b2, w3, b3 = params
    h1 = jnp.maximum(x @ w1 + b1, 0.0)
    h2 = jnp.maximum(h1 @ w2 + b2, 0.0)
    return (h2 @ w3.T + b3)[:, 0]


if __name__ == "__main__":
    key = jax.random.PRNGKey(0)
    kx, kx2, kx3, kp = jax.random.split(key, 4)

    input_dim = 16
    params = init_params(kp, input_dim)

    # Small case, exact-f32 compute path (tight tolerance).
    x_small = jax.random.normal(kx, (8, input_dim), jnp.float32)
    out_small = mlp_forward(x_small, params, compute_dtype=jnp.float32)
    jax.block_until_ready(out_small)
    ref_small = mlp_reference(x_small, params)
    assert out_small.shape == (8,)
    assert jnp.allclose(out_small, ref_small, atol=1e-3, rtol=1e-3)

    # Ragged batch, default bf16 MXU operands (f32 accumulation); no
    # wrapper-side x padding — tail block handled by Pallas partial-block DMA.
    x_big = jax.random.normal(kx2, (300, input_dim), jnp.float32)
    out_big = mlp_forward(x_big, params)
    jax.block_until_ready(out_big)
    ref_big = mlp_reference(x_big, params)
    assert out_big.shape == (300,)
    assert jnp.allclose(out_big, ref_big, atol=4e-2, rtol=4e-2)

    # Larger ragged batch: multi-step grid on 2-TC chips, 1-step on v5e/v6e.
    x_huge = jax.random.normal(kx3, (2500, input_dim), jnp.float32)
    out_huge = mlp_forward(x_huge, params)
    jax.block_until_ready(out_huge)
    ref_huge = mlp_reference(x_huge, params)
    assert out_huge.shape == (2500,)
    assert jnp.allclose(out_huge, ref_huge, atol=4e-2, rtol=4e-2)

    print("KERNEL_OK")
</pallas_src>

<mosaic_0001>
module attributes {stable_mosaic.version = 11 : i64} {
  func.func @_mlp_kernel(%arg0: i32, %arg1: memref<8x16xf32, #tpu.memory_space<vmem>>, %arg2: memref<16x64xf32, #tpu.memory_space<vmem>>, %arg3: memref<1x64xf32, #tpu.memory_space<vmem>>, %arg4: memref<64x32xf32, #tpu.memory_space<vmem>>, %arg5: memref<1x32xf32, #tpu.memory_space<vmem>>, %arg6: memref<1x32xf32, #tpu.memory_space<vmem>>, %arg7: memref<1x1xf32, #tpu.memory_space<vmem>>, %arg8: memref<1x8xf32, #tpu.memory_space<vmem>>) attributes {dimension_semantics = [#tpu.dimension_semantics<parallel>], iteration_bounds = array<i64: 1>, scalar_prefetch = 0 : i64, scratch_operands = 0 : i64, tpu.core_type = #tpu.core_type<tc>, window_params = [{transform_indices = @transform_0, window_bounds = array<i64: 8, 16>}, {pipeline_mode = #tpu.pipeline_mode<synchronous>, transform_indices = @transform_1, window_bounds = array<i64: 16, 64>}, {pipeline_mode = #tpu.pipeline_mode<synchronous>, transform_indices = @transform_2, window_bounds = array<i64: 1, 64>}, {pipeline_mode = #tpu.pipeline_mode<synchronous>, transform_indices = @transform_3, window_bounds = array<i64: 64, 32>}, {pipeline_mode = #tpu.pipeline_mode<synchronous>, transform_indices = @transform_4, window_bounds = array<i64: 1, 32>}, {pipeline_mode = #tpu.pipeline_mode<synchronous>, transform_indices = @transform_5, window_bounds = array<i64: 1, 32>}, {pipeline_mode = #tpu.pipeline_mode<synchronous>, transform_indices = @transform_6, window_bounds = array<i64: 1, 1>}, {transform_indices = @transform_7, window_bounds = array<i64: 1, 8>}]} {
    %c0 = arith.constant 0 : index
    %c0_0 = arith.constant 0 : index
    %0 = vector.load %arg1[%c0, %c0_0] : memref<8x16xf32, #tpu.memory_space<vmem>>, vector<8x16xf32>
    %c0_1 = arith.constant 0 : index
    %c0_2 = arith.constant 0 : index
    %1 = vector.load %arg2[%c0_1, %c0_2] : memref<16x64xf32, #tpu.memory_space<vmem>>, vector<16x64xf32>
    %cst = arith.constant dense<0.000000e+00> : vector<8x64xf32>
    %2 = tpu.matmul %0, %1, %cst {dimension_numbers = #tpu.dot_dimension_numbers<[1], [0], [0], [1], [0, 0, 1, 1], [], []>} : vector<8x16xf32>, vector<16x64xf32>, vector<8x64xf32> -> vector<8x64xf32>
    %c0_3 = arith.constant 0 : index
    %c0_4 = arith.constant 0 : index
    %3 = vector.load %arg3[%c0_3, %c0_4] : memref<1x64xf32, #tpu.memory_space<vmem>>, vector<1x64xf32>
    %4 = vector.broadcast %3 : vector<1x64xf32> to vector<8x64xf32>
    %5 = arith.addf %2, %4 : vector<8x64xf32>
    %cst_5 = arith.constant 0.000000e+00 : f32
    %6 = vector.broadcast %cst_5 : f32 to vector<8x64xf32>
    %7 = arith.maximumf %5, %6 : vector<8x64xf32>
    %c0_6 = arith.constant 0 : index
    %c0_7 = arith.constant 0 : index
    %8 = vector.load %arg4[%c0_6, %c0_7] : memref<64x32xf32, #tpu.memory_space<vmem>>, vector<64x32xf32>
    %cst_8 = arith.constant dense<0.000000e+00> : vector<8x32xf32>
    %9 = tpu.matmul %7, %8, %cst_8 {dimension_numbers = #tpu.dot_dimension_numbers<[1], [0], [0], [1], [0, 0, 1, 1], [], []>} : vector<8x64xf32>, vector<64x32xf32>, vector<8x32xf32> -> vector<8x32xf32>
    %c0_9 = arith.constant 0 : index
    %c0_10 = arith.constant 0 : index
    %10 = vector.load %arg5[%c0_9, %c0_10] : memref<1x32xf32, #tpu.memory_space<vmem>>, vector<1x32xf32>
    %11 = vector.broadcast %10 : vector<1x32xf32> to vector<8x32xf32>
    %12 = arith.addf %9, %11 : vector<8x32xf32>
    %cst_11 = arith.constant 0.000000e+00 : f32
    %13 = vector.broadcast %cst_11 : f32 to vector<8x32xf32>
    %14 = arith.maximumf %12, %13 : vector<8x32xf32>
    %c0_12 = arith.constant 0 : index
    %c0_13 = arith.constant 0 : index
    %15 = vector.load %arg6[%c0_12, %c0_13] : memref<1x32xf32, #tpu.memory_space<vmem>>, vector<1x32xf32>
    %16 = vector.broadcast %15 : vector<1x32xf32> to vector<8x32xf32>
    %17 = arith.mulf %14, %16 : vector<8x32xf32>
    %cst_14 = arith.constant dense<0.000000e+00> : vector<8xf32>
    %18 = vector.multi_reduction <add>, %17, %cst_14 [1] : vector<8x32xf32> to vector<8xf32>
    %19 = vector.shape_cast %18 : vector<8xf32> to vector<1x8xf32>
    %c0_15 = arith.constant 0 : index
    %c0_16 = arith.constant 0 : index
    %20 = vector.load %arg7[%c0_15, %c0_16] : memref<1x1xf32, #tpu.memory_space<vmem>>, vector<1x1xf32>
    %21 = vector.broadcast %20 : vector<1x1xf32> to vector<1x8xf32>
    %22 = arith.addf %19, %21 : vector<1x8xf32>
    %c0_17 = arith.constant 0 : index
    %c0_18 = arith.constant 0 : index
    %23 = vector.load %arg8[%c0_17, %c0_18] : memref<1x8xf32, #tpu.memory_space<vmem>>, vector<1x8xf32>
    tpu.vector_store %arg8[%c0_17, %c0_18], %22 {strides = array<i32>} : memref<1x8xf32, #tpu.memory_space<vmem>>, vector<1x8xf32>,
    return
  }
  func.func @transform_0(%arg0: i32) -> (i32, i32) {
    %c0_i32 = arith.constant 0 : i32
    %c0_i32_0 = arith.constant 0 : i32
    return %arg0, %c0_i32 : i32, i32
  }
  func.func @transform_1(%arg0: i32) -> (i32, i32) {
    %c0_i32 = arith.constant 0 : i32
    %c0_i32_0 = arith.constant 0 : i32
    %c0_i32_1 = arith.constant 0 : i32
    return %c0_i32, %c0_i32_0 : i32, i32
  }
  func.func @transform_2(%arg0: i32) -> (i32, i32) {
    %c0_i32 = arith.constant 0 : i32
    %c0_i32_0 = arith.constant 0 : i32
    %c0_i32_1 = arith.constant 0 : i32
    return %c0_i32, %c0_i32_0 : i32, i32
  }
  func.func @transform_3(%arg0: i32) -> (i32, i32) {
    %c0_i32 = arith.constant 0 : i32
    %c0_i32_0 = arith.constant 0 : i32
    %c0_i32_1 = arith.constant 0 : i32
    return %c0_i32, %c0_i32_0 : i32, i32
  }
  func.func @transform_4(%arg0: i32) -> (i32, i32) {
    %c0_i32 = arith.constant 0 : i32
    %c0_i32_0 = arith.constant 0 : i32
    %c0_i32_1 = arith.constant 0 : i32
    return %c0_i32, %c0_i32_0 : i32, i32
  }
  func.func @transform_5(%arg0: i32) -> (i32, i32) {
    %c0_i32 = arith.constant 0 : i32
    %c0_i32_0 = arith.constant 0 : i32
    %c0_i32_1 = arith.constant 0 : i32
    return %c0_i32, %c0_i32_0 : i32, i32
  }
  func.func @transform_6(%arg0: i32) -> (i32, i32) {
    %c0_i32 = arith.constant 0 : i32
    %c0_i32_0 = arith.constant 0 : i32
    %c0_i32_1 = arith.constant 0 : i32
    return %c0_i32, %c0_i32_0 : i32, i32
  }
  func.func @transform_7(%arg0: i32) -> (i32, i32) {
    %c0_i32 = arith.constant 0 : i32
    %c0_i32_0 = arith.constant 0 : i32
    return %c0_i32, %arg0 : i32, i32
  }
}

</mosaic_0001>

<llo_original>
// kernel: mlp_forward.1
$region0: #{mlp_forward.1}
  #allocation0 [shape = 'u32[]', space=smem, size = 0x4, offset = 0x4, fixed_abs, tag = 'smem constant byte address 0x4 - core index']
  #allocation1 [shape = 'u32[144,128]{1,0:T(1,128)}', space=vmem, size = 0x12000, scoped, tag = 'internal scratch']
  #allocation2 [shape = 'f32[1,1]{1,0:T(1,128)S(1)}', space=vmem, size = 0x200, scoped, tag = 'scoped memory for mlp_forward.1']
  %s0 = inlined_call_operand.vmem [shape: f32[8,16], index: 0, kind: input, shape index: {}]
  %s1 = inlined_call_operand.vmem [shape: f32[16,64], index: 1, kind: input, shape index: {}]
  %s2 = inlined_call_operand.vmem [shape: f32[1,64], index: 2, kind: input, shape index: {}]
  %s3 = inlined_call_operand.vmem [shape: f32[64,32], index: 3, kind: input, shape index: {}]
  %s4 = inlined_call_operand.vmem [shape: f32[1,32], index: 4, kind: input, shape index: {}]
  %s5 = inlined_call_operand.vmem [shape: f32[1,32], index: 5, kind: input, shape index: {}]
  %s6 = inlined_call_operand.<no memory space> [shape: f32[1,1], index: 6, kind: input, shape index: {}]
  %s7 = inlined_call_operand.hbm [shape: f32[1,8], index: 7, kind: output, shape index: {}]
  %s8 = sld [smem:[#allocation0]]
  $region38: #{mlp_forward.1} parent=0
    _
  %s10 = ssub.s32 1, %s8
  %s11 = scalar_select 0, %s10, %s8
  %v12 = vstv %s6
  %13 = vst [vmem:[#allocation2] sm:$0x1] %v12
  $region1: #{mlp_forward.1} parent=0
    #allocation3 [shape = 'u8[512]{0}', space=vmem, size = 0x400, scoped, tag = 'output window, operand 0, single buffered']
    #allocation4 [shape = 's32[1]{0}', space=sflag, size = 0x4, scoped, tag = 'scoped memory for mlp_forward.1']
    %14 = vsyncpa [#allocation4], 0
    // Predicated region
    $region2: #{mlp_forward.1} parent=1 // pred_check
      _
    $region3: #{mlp_forward.1} parent=1 // pred_check_branch
      %16 = sbr.rel (0) target = $region5
    $region4: #{mlp_forward.1} parent=1 // pred_region
      _
    $region5: #{mlp_forward.1} parent=1 // pred_fallthru
      _
    // Predicated region
    $region6: #{mlp_forward.1} parent=1 // pred_check
      _
    $region7: #{mlp_forward.1} parent=1 // pred_check_branch
      %18 = sbr.rel (0) target = $region9
    $region8: #{mlp_forward.1} parent=1 // pred_region
      _
    $region9: #{mlp_forward.1} parent=1 // pred_fallthru
      _
    // Predicated region
    $region10: #{mlp_forward.1} parent=1 // pred_check
      _
    $region11: #{mlp_forward.1} parent=1 // pred_check_branch
      %20 = sbr.rel (0) target = $region13
    $region12: #{mlp_forward.1} parent=1 // pred_region
      _
    $region13: #{mlp_forward.1} parent=1 // pred_fallthru
      _
    // Predicated region
    $region14: #{mlp_forward.1} parent=1 // pred_check
      _
    $region15: #{mlp_forward.1} parent=1 // pred_check_branch
      %22 = sbr.rel (0) target = $region17
    $region16: #{mlp_forward.1} parent=1 // pred_region
      _
    $region17: #{mlp_forward.1} parent=1 // pred_fallthru
      _
    // Predicated region
    $region18: #{mlp_forward.1} parent=1 // pred_check
      _
    $region19: #{mlp_forward.1} parent=1 // pred_check_branch
      %24 = sbr.rel (0) target = $region21
    $region20: #{mlp_forward.1} parent=1 // pred_region
      _
    $region21: #{mlp_forward.1} parent=1 // pred_fallthru
      _
    // Predicated region
    $region22: #{mlp_forward.1} parent=1 // pred_check
      _
    $region23: #{mlp_forward.1} parent=1 // pred_check_branch
      %26 = sbr.rel (0) target = $region25
    $region24: #{mlp_forward.1} parent=1 // pred_region
      _
    $region25: #{mlp_forward.1} parent=1 // pred_fallthru
      _
    // Predicated region
    $region26: #{mlp_forward.1} parent=1 // pred_check
      _
    $region27: #{mlp_forward.1} parent=1 // pred_check_branch
      %28 = sbr.rel (0) target = $region29
    $region28: #{mlp_forward.1} parent=1 // pred_region
      _
    $region29: #{mlp_forward.1} parent=1 // pred_fallthru
      _
    %v29 = vld [vmem:[%s0] sm:$0xff]
    %v30 = vld [vmem:[%s1] sm:$0xff]
    %v31 = vld [vmem:[%s1 + $0x8] sm:$0xff]
    %v32 = vld [vmem:[%s2] sm:$0x1]
    %v34 = vlaneseq
    %v35 = vshrl.u32 %v34, 7
    %v36 = vsub.s32 0, %v35
    %v37 = vrot.slane %v32, %v36
    %vm39 = vcmask 130048
    %v41 = vsel %vm39, %v29, 0
    %43 = vmatprep.subr.mxu0 0.0
    %44 = vmatpush1.msra.mxu0 0.0
    %45 = vmatprep.subr.mxu0 0.0
    %46 = vmatpush1.msra.mxu0 0.0
    %47 = vmatprep.subr.mxu0 0.0
    %48 = vmatpush1.msra.mxu0 0.0
    %49 = vmatprep.subr.mxu0 0.0
    %50 = vmatpush1.msra.mxu0 0.0
    %51 = vmatprep.subr.mxu0 0.0
    %52 = vmatpush1.msra.mxu0 0.0
    %53 = vmatprep.subr.mxu0 0.0
    %54 = vmatpush1.msra.mxu0 0.0
    %55 = vmatprep.subr.mxu0 0.0
    %56 = vmatpush1.msra.mxu0 0.0
    %57 = vmatprep.subr.mxu0 0.0
    %58 = vmatpush1.msra.mxu0 0.0
    %59 = vmatprep.subr.mxu0 0.0
    %60 = vmatpush1.msra.mxu0 0.0
    %61 = vmatprep.subr.mxu0 0.0
    %62 = vmatpush1.msra.mxu0 0.0
    %63 = vmatprep.subr.mxu0 0.0
    %64 = vmatpush1.msra.mxu0 0.0
    %65 = vmatprep.subr.mxu0 0.0
    %66 = vmatpush1.msra.mxu0 0.0
    %67 = vmatprep.subr.mxu0 0.0
    %68 = vmatpush1.msra.mxu0 0.0
    %69 = vmatprep.subr.mxu0 0.0
    %70 = vmatpush1.msra.mxu0 0.0
    %71 = vmatprep.subr.mxu0 0.0
    %72 = vmatpush1.msra.mxu0 %v31
    %73 = vmatprep.subr.mxu0 0.0
    %74 = vmatpush1.msra.mxu0 %v30
    %75 = vmatprep.subr.mxu0 0.0
    %76 = vmatpush2.msra.mxu0 0.0
    %77 = vmatprep.subr.mxu0 0.0
    %78 = vmatpush2.msra.mxu0 0.0
    %79 = vmatprep.subr.mxu0 0.0
    %80 = vmatpush2.msra.mxu0 0.0
    %81 = vmatprep.subr.mxu0 0.0
    %82 = vmatpush2.msra.mxu0 0.0
    %83 = vmatprep.subr.mxu0 0.0
    %84 = vmatpush2.msra.mxu0 0.0
    %85 = vmatprep.subr.mxu0 0.0
    %86 = vmatpush2.msra.mxu0 0.0
    %87 = vmatprep.subr.mxu0 0.0
    %88 = vmatpush2.msra.mxu0 0.0
    %89 = vmatprep.subr.mxu0 0.0
    %90 = vmatpush2.msra.mxu0 0.0
    %91 = vmatprep.subr.mxu0 0.0
    %92 = vmatpush2.msra.mxu0 0.0
    %93 = vmatprep.subr.mxu0 0.0
    %94 = vmatpush2.msra.mxu0 0.0
    %95 = vmatprep.subr.mxu0 0.0
    %96 = vmatpush2.msra.mxu0 0.0
    %97 = vmatprep.subr.mxu0 0.0
    %98 = vmatpush2.msra.mxu0 0.0
    %99 = vmatprep.subr.mxu0 0.0
    %100 = vmatpush2.msra.mxu0 0.0
    %101 = vmatprep.subr.mxu0 0.0
    %102 = vmatpush2.msra.mxu0 0.0
    %103 = vmatprep.subr.mxu0 0.0
    %104 = vmatpush2.msra.mxu0 0.0
    %105 = vmatprep.subr.mxu0 0.0
    %106 = vmatpush2.msra.mxu0 0.0
    %107 = vmatprep.mubr.f32.mxu0 0.0
    %108 = vmatmul.mubr.f32.gmra.mxu0 %v41
    %v109 = vpop.f32.mrf.mxu0
    %v110 = vadd.f32 %v37, %v109
    %v111 = vpop.f32.mrf.mxu0
    %112 = vdwg.mxu0
    %v113 = vmax.f32 %v110, 0.0
    %v114 = vld [vmem:[%s3] sm:$0xff]
    %v115 = vld [vmem:[%s3 + $0x8] sm:$0xff]
    %v116 = vld [vmem:[%s3 + $0x10] sm:$0xff]
    %v117 = vld [vmem:[%s3 + $0x18] sm:$0xff]
    %v118 = vld [vmem:[%s3 + $0x20] sm:$0xff]
    %v119 = vld [vmem:[%s3 + $0x28] sm:$0xff]
    %v120 = vld [vmem:[%s3 + $0x30] sm:$0xff]
    %v121 = vld [vmem:[%s3 + $0x38] sm:$0xff]
    %v122 = vld [vmem:[%s4] sm:$0x1]
    %v124 = vlaneseq
    %v125 = vshrl.u32 %v124, 7
    %v126 = vsub.s32 0, %v125
    %v127 = vrot.slane %v122, %v126
    %vm129 = vcmask 523264
    %v131 = vsel %vm129, %v113, 0
    %133 = vmatprep.subr.mxu0 0.0
    %134 = vmatpush1.msra.mxu0 0.0
    %135 = vmatprep.subr.mxu0 0.0
    %136 = vmatpush1.msra.mxu0 0.0
    %137 = vmatprep.subr.mxu0 0.0
    %138 = vmatpush1.msra.mxu0 0.0
    %139 = vmatprep.subr.mxu0 0.0
    %140 = vmatpush1.msra.mxu0 0.0
    %141 = vmatprep.subr.mxu0 0.0
    %142 = vmatpush1.msra.mxu0 0.0
    %143 = vmatprep.subr.mxu0 0.0
    %144 = vmatpush1.msra.mxu0 0.0
    %145 = vmatprep.subr.mxu0 0.0
    %146 = vmatpush1.msra.mxu0 0.0
    %147 = vmatprep.subr.mxu0 0.0
    %148 = vmatpush1.msra.mxu0 0.0
    %149 = vmatprep.subr.mxu0 0.0
    %150 = vmatpush1.msra.mxu0 %v121
    %151 = vmatprep.subr.mxu0 0.0
    %152 = vmatpush1.msra.mxu0 %v120
    %153 = vmatprep.subr.mxu0 0.0
    %154 = vmatpush1.msra.mxu0 %v119
    %155 = vmatprep.subr.mxu0 0.0
    %156 = vmatpush1.msra.mxu0 %v118
    %157 = vmatprep.subr.mxu0 0.0
    %158 = vmatpush1.msra.mxu0 %v117
    %159 = vmatprep.subr.mxu0 0.0
    %160 = vmatpush1.msra.mxu0 %v116
    %161 = vmatprep.subr.mxu0 0.0
    %162 = vmatpush1.msra.mxu0 %v115
    %163 = vmatprep.subr.mxu0 0.0
    %164 = vmatpush1.msra.mxu0 %v114
    %165 = vmatprep.subr.mxu0 0.0
    %166 = vmatpush2.msra.mxu0 0.0
    %167 = vmatprep.subr.mxu0 0.0
    %168 = vmatpush2.msra.mxu0 0.0
    %169 = vmatprep.subr.mxu0 0.0
    %170 = vmatpush2.msra.mxu0 0.0
    %171 = vmatprep.subr.mxu0 0.0
    %172 = vmatpush2.msra.mxu0 0.0
    %173 = vmatprep.subr.mxu0 0.0
    %174 = vmatpush2.msra.mxu0 0.0
    %175 = vmatprep.subr.mxu0 0.0
    %176 = vmatpush2.msra.mxu0 0.0
    %177 = vmatprep.subr.mxu0 0.0
    %178 = vmatpush2.msra.mxu0 0.0
    %179 = vmatprep.subr.mxu0 0.0
    %180 = vmatpush2.msra.mxu0 0.0
    %181 = vmatprep.subr.mxu0 0.0
    %182 = vmatpush2.msra.mxu0 0.0
    %183 = vmatprep.subr.mxu0 0.0
    %184 = vmatpush2.msra.mxu0 0.0
    %185 = vmatprep.subr.mxu0 0.0
    %186 = vmatpush2.msra.mxu0 0.0
    %187 = vmatprep.subr.mxu0 0.0
    %188 = vmatpush2.msra.mxu0 0.0
    %189 = vmatprep.subr.mxu0 0.0
    %190 = vmatpush2.msra.mxu0 0.0
    %191 = vmatprep.subr.mxu0 0.0
    %192 = vmatpush2.msra.mxu0 0.0
    %193 = vmatprep.subr.mxu0 0.0
    %194 = vmatpush2.msra.mxu0 0.0
    %195 = vmatprep.subr.mxu0 0.0
    %196 = vmatpush2.msra.mxu0 0.0
    %197 = vmatprep.mubr.f32.mxu0 0.0
    %198 = vmatmul.mubr.f32.gmra.mxu0 %v131
    %v199 = vpop.f32.mrf.mxu0
    %v200 = vadd.f32 %v127, %v199
    %v201 = vpop.f32.mrf.mxu0
    %202 = vdwg.mxu0
    %v203 = vmax.f32 %v200, 0.0
    %v204 = vld [vmem:[%s5] sm:$0x1]
    %v206 = vlaneseq
    %v207 = vshrl.u32 %v206, 7
    %v208 = vsub.s32 0, %v207
    %v209 = vrot.slane %v204, %v208
    %v211 = vmul.f32 %v203, %v209
    %vm212 = vcmask 261120
    %v213 = vsel %vm212, %v211, 0.0
    %214 = vadd.xlane.f32.xlu0 %v213
    %v215 = vpop.xlane.xlu0 %214
    %v216 = vld [vmem:[#allocation2] sm:$0x1]
    %218 = vset.pattern.permute.xlu0 0
    %219 = vperm.xlu0 %218, %v216
    %v220 = vpop.permute.xlu0 %219
    %v222 = vlaneseq
    %v223 = vshrl.u32 %v222, 7
    %v224 = vsub.s32 0, %v223
    %v225 = vrot.slane %v220, %v224
    %v226 = vadd.f32 %v215, %v225
    %v228 = vlaneseq
    %v229 = vand.u32 %v228, 127
    %v230 = vlaneseq
    %v231 = vshrl.u32 %v230, 7
    %v232 = vsub.s32 %v229, %v231
    %v233 = vrot.slane %v226, %v232
    %vm235 = vcmask 57344
    %236 = vst.msk [vmem:[#allocation3] sm:$0x1] %vm235, %v233
    // Predicated region
    $region30: #{mlp_forward.1} parent=1 // pred_check
      _
    $region31: #{mlp_forward.1} parent=1 // pred_check_branch
      %238 = sbr.rel (0) target = $region33
    $region32: #{mlp_forward.1} parent=1 // pred_region
      %s240 = ssub.s32 16, 16
      %241 = vsyncadd [#allocation4], %s240
      %s243 = sshll.u32 [#allocation3], 4
      %s244 = int_to_ptr.vmem [resolvable:$true] %s243
      %246 = dma.vmem_to_hbm [thread:$0]  %s244, 16, %s7, [#allocation4]
    $region33: #{mlp_forward.1} parent=1 // pred_fallthru
      _
    // Predicated region
    $region34: #{mlp_forward.1} parent=1 // pred_check
      _
    $region35: #{mlp_forward.1} parent=1 // pred_check_branch
      %248 = sbr.rel (0) target = $region37
    $region36: #{mlp_forward.1} parent=1 // pred_region
      %249 = dma.done [#allocation4], 16
    $region37: #{mlp_forward.1} parent=1 // pred_fallthru
      _
    %250 = vsyncpa [#allocation4], 1

</llo_original>
